<compile_context>
chip_gen: v7x
topology: tpu7x:2x2x1
jax: 0.10.0
libtpu: 0.0.40
codegen_flags: <defaults>
</compile_context>

<pallas_src>
import math

import jax
import jax.numpy as jnp
from jax.experimental import pallas as pl
from jax.experimental.pallas import tpu as pltpu


def _round_up(x, m):
    return (x + m - 1) // m * m


def _box_offset_kernel(x_ref, w1t_ref, b1_ref, w2t_ref, b2_ref, out_ref):
    # x_ref: (N, tB, D) f32; w*t_ref: (D, D) bf16 pre-transposed; b*_ref: (1, D) f32
    N, tB, D = x_ref.shape

    x = x_ref[...]                                       # (N, tB, D) f32

    # --- layer1 on all conjuncts as ONE MXU matmul -------------------------
    # (N, tB, D) -> (N*tB, D) is a free leading-dim view (tB%8==0, D%128==0).
    x2 = x.reshape(N * tB, D)
    h = jnp.dot(x2.astype(jnp.bfloat16), w1t_ref[...],
                preferred_element_type=jnp.float32)      # (N*tB, D) f32 accum
    # Single bias broadcast + ReLU in f32.
    h = jnp.maximum(h + b1_ref[...], 0.0)

    # Mean over conjuncts: free view back to (N, tB, D), axis-0 VPU sum.
    mean_h = jnp.sum(h.reshape(N, tB, D), axis=0) * (1.0 / N)     # (tB, D) f32

    # --- layer2 + sigmoid gate ---------------------------------------------
    g = jnp.dot(mean_h.astype(jnp.bfloat16), w2t_ref[...],
                preferred_element_type=jnp.float32) + b2_ref[...]
    # exp and approx reciprocal both issue on the EUP slot.
    gate = pl.reciprocal(1.0 + jnp.exp(-g), approx=True)          # (tB, D)

    # Min over conjuncts (exact, f32, VPU).
    offset = jnp.min(x, axis=0)                                    # (tB, D)

    out_ref[...] = (offset * gate).astype(out_ref.dtype)


def prepare_params(w1, b1, w2, b2):
    """One-time parameter layout prep (do NOT call per forward).

    PyTorch nn.Linear weights are (out, in); pre-transpose to (in, out) and
    cast to bf16 (MXU operands), so the kernel computes x @ Wt + b with f32
    accumulation.  Biases stay f32 as (1, D) rows."""
    D = w1.shape[0]
    return (w1.T.astype(jnp.bfloat16), b1.reshape(1, D).astype(jnp.float32),
            w2.T.astype(jnp.bfloat16), b2.reshape(1, D).astype(jnp.float32))


def _const_spec(shape, pipeline_mode=None):
    # Block whose index_map is constant across the grid.
    idx = lambda j: (0,) * len(shape)
    if pipeline_mode is None:
        return pl.BlockSpec(shape, idx)
    return pl.BlockSpec(shape, idx, pipeline_mode=pipeline_mode)


def box_offset_intersection(embeddings, w1t, b1r, w2t, b2r, *, block_b=128,
                            single_buffer_weights=None):
    """embeddings: (N, B, D) float32; prepared params from prepare_params().
    Returns (B, D) float32."""
    N, B, D = embeddings.shape

    # Batch tile: multiple of 8 (sublane), <= block_b; pad B up if needed.
    tB = min(block_b, _round_up(B, 8))
    B_pad = _round_up(B, tB)
    x = embeddings
    if B_pad != B:
        x = jnp.pad(x, ((0, 0), (0, B_pad - B), (0, 0)))

    grid = (B_pad // tB,)

    # Single-buffer the constant weight/bias blocks when they are a
    # meaningful fraction of scoped VMEM (production D); demo keeps default.
    if single_buffer_weights is None:
        single_buffer_weights = D >= 512
    weight_mode = pl.Buffered(1) if single_buffer_weights else None

    # VMEM footprint estimate (x/out double-buffered by the pipeline).
    wbufs = 1 if single_buffer_weights else 2
    est_vmem = (2 * N * tB * D * 4            # x block, f32, double buffered
                + 2 * tB * D * 4              # out block, f32, double buffered
                + wbufs * 2 * D * D * 2       # W1^T + W2^T, bf16
                + wbufs * 2 * D * 4)          # biases, f32
    cp_kwargs = dict(dimension_semantics=("parallel",))   # batch axis -> both TCs on v7x
    if est_vmem > (16 << 20):                 # beyond v5e's scoped default
        cp_kwargs["vmem_limit_bytes"] = min(est_vmem * 3 // 2 + (4 << 20), 96 << 20)

    cost = pl.CostEstimate(
        flops=2 * (N + 1) * B_pad * D * D,
        transcendentals=B_pad * D,
        bytes_accessed=(N * B_pad * D + B_pad * D) * 4 + 2 * D * D * 2 + 2 * D * 4,
    )

    out = pl.pallas_call(
        _box_offset_kernel,
        out_shape=jax.ShapeDtypeStruct((B_pad, D), embeddings.dtype),
        grid_spec=pltpu.PrefetchScalarGridSpec(
            num_scalar_prefetch=0,
            grid=grid,
            in_specs=[
                pl.BlockSpec((N, tB, D), lambda j: (0, j, 0)),     # embeddings
                _const_spec((D, D), weight_mode),                   # W1^T (bf16)
                _const_spec((1, D), weight_mode),                   # b1
                _const_spec((D, D), weight_mode),                   # W2^T (bf16)
                _const_spec((1, D), weight_mode),                   # b2
            ],
            out_specs=pl.BlockSpec((tB, D), lambda j: (j, 0)),
        ),
        compiler_params=pltpu.CompilerParams(**cp_kwargs),
        cost_estimate=cost,
    )(x, w1t, b1r, w2t, b2r)

    return out[:B] if B_pad != B else out


def _reference(embeddings, w1, b1, w2, b2):
    # Pure-JAX f32 reference mirroring the PyTorch forward exactly.
    h = jax.nn.relu(jnp.einsum("nbd,ed->nbe", embeddings, w1) + b1)
    layer1_mean = jnp.mean(h, axis=0)
    gate = jax.nn.sigmoid(jnp.einsum("bd,ed->be", layer1_mean, w2) + b2)
    offset = jnp.min(embeddings, axis=0)
    return offset * gate


def _init_params(key, dim):
    # nn.Linear weight shape: (out_features, in_features) = (dim, dim),
    # xavier_uniform init; bias default init: U(-1/sqrt(fan_in), 1/sqrt(fan_in)).
    k1, k2, k3, k4 = jax.random.split(key, 4)
    xavier_bound = math.sqrt(6.0 / (dim + dim))
    bias_bound = 1.0 / math.sqrt(dim)
    w1 = jax.random.uniform(k1, (dim, dim), jnp.float32, -xavier_bound, xavier_bound)
    w2 = jax.random.uniform(k2, (dim, dim), jnp.float32, -xavier_bound, xavier_bound)
    b1 = jax.random.uniform(k3, (dim,), jnp.float32, -bias_bound, bias_bound)
    b2 = jax.random.uniform(k4, (dim,), jnp.float32, -bias_bound, bias_bound)
    return w1, b1, w2, b2


if __name__ == "__main__":
    key = jax.random.PRNGKey(0)
    k_emb, k_params = jax.random.split(key)

    # (num_conjuncts, batch, dim): D=128 keeps blocks lane-dense; batch small.
    N, B, D = 8, 16, 128
    embeddings = jax.random.normal(k_emb, (N, B, D), dtype=jnp.float32)
    w1, b1, w2, b2 = _init_params(k_params, D)

    # One-time layout prep (transposes / bf16 casts hoisted off the call path).
    w1t, b1r, w2t, b2r = prepare_params(w1, b1, w2, b2)

    # block_b >= B -> one lane/sublane-dense tile, single grid step (demo regime).
    out = box_offset_intersection(embeddings, w1t, b1r, w2t, b2r, block_b=128)
    out = jax.block_until_ready(out)

    ref = _reference(embeddings, w1, b1, w2, b2)
    assert out.shape == (B, D)
    # Tolerance covers bf16 MXU operands (f32 accumulation) and the EUP
    # approximate reciprocal in the sigmoid.
    assert jnp.allclose(out, ref, atol=2e-2, rtol=2e-2), "mismatch vs reference"

    print("KERNEL_OK")
</pallas_src>

<mosaic_0001>
module attributes {stable_mosaic.version = 11 : i64} {
  func.func @_box_offset_kernel(%arg0: i32, %arg1: memref<8x16x128xf32, #tpu.memory_space<vmem>>, %arg2: memref<128x128xbf16, #tpu.memory_space<vmem>>, %arg3: memref<1x128xf32, #tpu.memory_space<vmem>>, %arg4: memref<128x128xbf16, #tpu.memory_space<vmem>>, %arg5: memref<1x128xf32, #tpu.memory_space<vmem>>, %arg6: memref<16x128xf32, #tpu.memory_space<vmem>>) attributes {dimension_semantics = [#tpu.dimension_semantics<parallel>], iteration_bounds = array<i64: 1>, scalar_prefetch = 0 : i64, scratch_operands = 0 : i64, tpu.core_type = #tpu.core_type<tc>, window_params = [{transform_indices = @transform_0, window_bounds = array<i64: 8, 16, 128>}, {pipeline_mode = #tpu.pipeline_mode<synchronous>, transform_indices = @transform_1, window_bounds = array<i64: 128, 128>}, {pipeline_mode = #tpu.pipeline_mode<synchronous>, transform_indices = @transform_2, window_bounds = array<i64: 1, 128>}, {pipeline_mode = #tpu.pipeline_mode<synchronous>, transform_indices = @transform_3, window_bounds = array<i64: 128, 128>}, {pipeline_mode = #tpu.pipeline_mode<synchronous>, transform_indices = @transform_4, window_bounds = array<i64: 1, 128>}, {transform_indices = @transform_5, window_bounds = array<i64: 16, 128>}]} {
    %c0 = arith.constant 0 : index
    %c0_0 = arith.constant 0 : index
    %c0_1 = arith.constant 0 : index
    %0 = vector.load %arg1[%c0, %c0_0, %c0_1] : memref<8x16x128xf32, #tpu.memory_space<vmem>>, vector<8x16x128xf32>
    %1 = vector.shape_cast %0 : vector<8x16x128xf32> to vector<128x128xf32>
    %2 = arith.truncf %1 : vector<128x128xf32> to vector<128x128xbf16>
    %c0_2 = arith.constant 0 : index
    %c0_3 = arith.constant 0 : index
    %3 = vector.load %arg2[%c0_2, %c0_3] : memref<128x128xbf16, #tpu.memory_space<vmem>>, vector<128x128xbf16>
    %cst = arith.constant dense<0.000000e+00> : vector<128x128xf32>
    %4 = tpu.matmul %2, %3, %cst {dimension_numbers = #tpu.dot_dimension_numbers<[1], [0], [0], [1], [0, 0, 1, 1], [], []>} : vector<128x128xbf16>, vector<128x128xbf16>, vector<128x128xf32> -> vector<128x128xf32>
    %c0_4 = arith.constant 0 : index
    %c0_5 = arith.constant 0 : index
    %5 = vector.load %arg3[%c0_4, %c0_5] : memref<1x128xf32, #tpu.memory_space<vmem>>, vector<1x128xf32>
    %6 = vector.broadcast %5 : vector<1x128xf32> to vector<128x128xf32>
    %7 = arith.addf %4, %6 : vector<128x128xf32>
    %cst_6 = arith.constant 0.000000e+00 : f32
    %8 = vector.broadcast %cst_6 : f32 to vector<128x128xf32>
    %9 = arith.maximumf %7, %8 : vector<128x128xf32>
    %10 = vector.shape_cast %9 : vector<128x128xf32> to vector<8x16x128xf32>
    %cst_7 = arith.constant dense<0.000000e+00> : vector<16x128xf32>
    %11 = vector.multi_reduction <add>, %10, %cst_7 [0] : vector<8x16x128xf32> to vector<16x128xf32>
    %cst_8 = arith.constant 1.250000e-01 : f32
    %12 = vector.broadcast %cst_8 : f32 to vector<16x128xf32>
    %13 = arith.mulf %11, %12 : vector<16x128xf32>
    %14 = arith.truncf %13 : vector<16x128xf32> to vector<16x128xbf16>
    %c0_9 = arith.constant 0 : index
    %c0_10 = arith.constant 0 : index
    %15 = vector.load %arg4[%c0_9, %c0_10] : memref<128x128xbf16, #tpu.memory_space<vmem>>, vector<128x128xbf16>
    %cst_11 = arith.constant dense<0.000000e+00> : vector<16x128xf32>
    %16 = tpu.matmul %14, %15, %cst_11 {dimension_numbers = #tpu.dot_dimension_numbers<[1], [0], [0], [1], [0, 0, 1, 1], [], []>} : vector<16x128xbf16>, vector<128x128xbf16>, vector<16x128xf32> -> vector<16x128xf32>
    %c0_12 = arith.constant 0 : index
    %c0_13 = arith.constant 0 : index
    %17 = vector.load %arg5[%c0_12, %c0_13] : memref<1x128xf32, #tpu.memory_space<vmem>>, vector<1x128xf32>
    %18 = vector.broadcast %17 : vector<1x128xf32> to vector<16x128xf32>
    %19 = arith.addf %16, %18 : vector<16x128xf32>
    %cst_14 = arith.constant 0.000000e+00 : f32
    %20 = vector.broadcast %cst_14 : f32 to vector<16x128xf32>
    %21 = arith.subf %20, %19 : vector<16x128xf32>
    %22 = math.exp %21 : vector<16x128xf32>
    %cst_15 = arith.constant 1.000000e+00 : f32
    %23 = vector.broadcast %cst_15 : f32 to vector<16x128xf32>
    %24 = arith.addf %23, %22 : vector<16x128xf32>
    %25 = tpu.reciprocal %24 {approx = true} : vector<16x128xf32> -> vector<16x128xf32>
    %cst_16 = arith.constant dense<0x7F800000> : vector<16x128xf32>
    %26 = vector.multi_reduction <minimumf>, %0, %cst_16 [0] : vector<8x16x128xf32> to vector<16x128xf32>
    %27 = arith.mulf %26, %25 : vector<16x128xf32>
    %c0_17 = arith.constant 0 : index
    %c0_18 = arith.constant 0 : index
    %28 = vector.load %arg6[%c0_17, %c0_18] : memref<16x128xf32, #tpu.memory_space<vmem>>, vector<16x128xf32>
    tpu.vector_store %arg6[%c0_17, %c0_18], %27 {strides = array<i32>} : memref<16x128xf32, #tpu.memory_space<vmem>>, vector<16x128xf32>,
    return
  }
  func.func @transform_0(%arg0: i32) -> (i32, i32, i32) {
    %c0_i32 = arith.constant 0 : i32
    %c0_i32_0 = arith.constant 0 : i32
    %c0_i32_1 = arith.constant 0 : i32
    return %c0_i32, %arg0, %c0_i32_0 : i32, i32, i32
  }
  func.func @transform_1(%arg0: i32) -> (i32, i32) {
    %c0_i32 = arith.constant 0 : i32
    %c0_i32_0 = arith.constant 0 : i32
    %c0_i32_1 = arith.constant 0 : i32
    return %c0_i32, %c0_i32_0 : i32, i32
  }
  func.func @transform_2(%arg0: i32) -> (i32, i32) {
    %c0_i32 = arith.constant 0 : i32
    %c0_i32_0 = arith.constant 0 : i32
    %c0_i32_1 = arith.constant 0 : i32
    return %c0_i32, %c0_i32_0 : i32, i32
  }
  func.func @transform_3(%arg0: i32) -> (i32, i32) {
    %c0_i32 = arith.constant 0 : i32
    %c0_i32_0 = arith.constant 0 : i32
    %c0_i32_1 = arith.constant 0 : i32
    return %c0_i32, %c0_i32_0 : i32, i32
  }
  func.func @transform_4(%arg0: i32) -> (i32, i32) {
    %c0_i32 = arith.constant 0 : i32
    %c0_i32_0 = arith.constant 0 : i32
    %c0_i32_1 = arith.constant 0 : i32
    return %c0_i32, %c0_i32_0 : i32, i32
  }
  func.func @transform_5(%arg0: i32) -> (i32, i32) {
    %c0_i32 = arith.constant 0 : i32
    %c0_i32_0 = arith.constant 0 : i32
    return %arg0, %c0_i32 : i32, i32
  }
}

</mosaic_0001>

<llo_original>
// kernel: tpu_custom_call.1
$region0: #{tpu_custom_call.1}
  #allocation0 [shape = 'u32[]', space=smem, size = 0x4, offset = 0x4, fixed_abs, tag = 'smem constant byte address 0x4 - core index']
  #allocation1 [shape = 'u32[144,128]{1,0:T(1,128)}', space=vmem, size = 0x12000, scoped, tag = 'internal scratch']
  %s0 = inlined_call_operand.hbm [shape: f32[8,16,128], index: 0, kind: input, shape index: {}]
  %s1 = inlined_call_operand.hbm [shape: bf16[128,128], index: 1, kind: input, shape index: {}]
  %s2 = inlined_call_operand.vmem [shape: f32[1,128], index: 2, kind: input, shape index: {}]
  %s3 = inlined_call_operand.hbm [shape: bf16[128,128], index: 3, kind: input, shape index: {}]
  %s4 = inlined_call_operand.vmem [shape: f32[1,128], index: 4, kind: input, shape index: {}]
  %s5 = inlined_call_operand.hbm [shape: f32[16,128], index: 5, kind: output, shape index: {}]
  %s6 = sld [smem:[#allocation0]]
  $region42: #{tpu_custom_call.1} parent=0
    _
  %s8 = ssub.s32 1, %s6
  %s9 = scalar_select 0, %s8, %s6
  $region1: #{tpu_custom_call.1} parent=0
    #allocation2 [shape = 'u8[65536]{0}', space=vmem, size = 0x10000, scoped, tag = 'input window, operand 0, single buffered']
    #allocation3 [shape = 's32[1]{0}', space=sflag, size = 0x4, scoped, tag = 'scoped memory for tpu_custom_call.1']
    #allocation4 [shape = 's32[1]{0}', space=sflag, size = 0x4, scoped, tag = 'scoped memory for tpu_custom_call.1']
    #allocation5 [shape = 'u8[32768]{0}', space=vmem, size = 0x8000, scoped, tag = 'input window, operand 1, single buffered']
    #allocation6 [shape = 's32[1]{0}', space=sflag, size = 0x4, scoped, tag = 'scoped memory for tpu_custom_call.1']
    #allocation7 [shape = 'u8[32768]{0}', space=vmem, size = 0x8000, scoped, tag = 'input window, operand 3, single buffered']
    #allocation8 [shape = 'u8[8192]{0}', space=vmem, size = 0x2000, scoped, tag = 'output window, operand 0, single buffered']
    %10 = vsyncpa [#allocation3], 0
    %11 = vsyncpa [#allocation6], 0
    %12 = vsyncpa [#allocation4], 0
    // Predicated region
    $region2: #{tpu_custom_call.1} parent=1 // pred_check
      _
    $region3: #{tpu_custom_call.1} parent=1 // pred_check_branch
      %14 = sbr.rel (0) target = $region5
    $region4: #{tpu_custom_call.1} parent=1 // pred_region
      %s16 = ssub.s32 2048, 2048
      %17 = vsyncadd [#allocation3], %s16
      %s18 = sshll.u32 [#allocation2], 4
      %s19 = int_to_ptr.vmem [resolvable:$true] %s18
      %24 = dma.hbm_to_vmem [thread:$0]  %s0, 2048, %s19, [#allocation3], 128, 128, 8
    $region5: #{tpu_custom_call.1} parent=1 // pred_fallthru
      _
    // Predicated region
    $region6: #{tpu_custom_call.1} parent=1 // pred_check
      _
    $region7: #{tpu_custom_call.1} parent=1 // pred_check_branch
      %26 = sbr.rel (0) target = $region9
    $region8: #{tpu_custom_call.1} parent=1 // pred_region
      %s28 = ssub.s32 1024, 1024
      %29 = vsyncadd [#allocation6], %s28
      %s30 = sshll.u32 [#allocation5], 4
      %s31 = int_to_ptr.vmem [resolvable:$true] %s30
      %36 = dma.hbm_to_vmem [thread:$0]  %s1, 1024, %s31, [#allocation6], 64, 64, 4
    $region9: #{tpu_custom_call.1} parent=1 // pred_fallthru
      _
    // Predicated region
    $region10: #{tpu_custom_call.1} parent=1 // pred_check
      _
    $region11: #{tpu_custom_call.1} parent=1 // pred_check_branch
      %38 = sbr.rel (0) target = $region13
    $region12: #{tpu_custom_call.1} parent=1 // pred_region
      _
    $region13: #{tpu_custom_call.1} parent=1 // pred_fallthru
      _
    // Predicated region
    $region14: #{tpu_custom_call.1} parent=1 // pred_check
      _
    $region15: #{tpu_custom_call.1} parent=1 // pred_check_branch
      %40 = sbr.rel (0) target = $region17
    $region16: #{tpu_custom_call.1} parent=1 // pred_region
      %s42 = ssub.s32 1024, 1024
      %43 = vsyncadd [#allocation6], %s42
      %s44 = sshll.u32 [#allocation7], 4
      %s45 = int_to_ptr.vmem [resolvable:$true] %s44
      %50 = dma.hbm_to_vmem [thread:$0]  %s3, 1024, %s45, [#allocation6], 64, 64, 4
    $region17: #{tpu_custom_call.1} parent=1 // pred_fallthru
      _
    // Predicated region
    $region18: #{tpu_custom_call.1} parent=1 // pred_check
      _
    $region19: #{tpu_custom_call.1} parent=1 // pred_check_branch
      %52 = sbr.rel (0) target = $region21
    $region20: #{tpu_custom_call.1} parent=1 // pred_region
      _
    $region21: #{tpu_custom_call.1} parent=1 // pred_fallthru
      _
    // Predicated region
    $region22: #{tpu_custom_call.1} parent=1 // pred_check
      _
    $region23: #{tpu_custom_call.1} parent=1 // pred_check_branch
      %54 = sbr.rel (0) target = $region25
    $region24: #{tpu_custom_call.1} parent=1 // pred_region
      %55 = dma.done [#allocation3], 2048
    $region25: #{tpu_custom_call.1} parent=1 // pred_fallthru
      _
    // Predicated region
    $region26: #{tpu_custom_call.1} parent=1 // pred_check
      _
    $region27: #{tpu_custom_call.1} parent=1 // pred_check_branch
      %57 = sbr.rel (0) target = $region29
    $region28: #{tpu_custom_call.1} parent=1 // pred_region
      %58 = dma.done [#allocation6], 1024
    $region29: #{tpu_custom_call.1} parent=1 // pred_fallthru
      _
    // Predicated region
    $region30: #{tpu_custom_call.1} parent=1 // pred_check
      _
    $region31: #{tpu_custom_call.1} parent=1 // pred_check_branch
      %60 = sbr.rel (0) target = $region33
    $region32: #{tpu_custom_call.1} parent=1 // pred_region
      %61 = dma.done [#allocation6], 1024
    $region33: #{tpu_custom_call.1} parent=1 // pred_fallthru
      _
    %v63 = vld [vmem:[#allocation2] sm:$0xff]
    %v64 = vld [vmem:[#allocation2 + $0x8] sm:$0xff]
    %v65 = vld [vmem:[#allocation2 + $0x10] sm:$0xff]
    %v66 = vld [vmem:[#allocation2 + $0x18] sm:$0xff]
    %v67 = vld [vmem:[#allocation2 + $0x20] sm:$0xff]
    %v68 = vld [vmem:[#allocation2 + $0x28] sm:$0xff]
    %v69 = vld [vmem:[#allocation2 + $0x30] sm:$0xff]
    %v70 = vld [vmem:[#allocation2 + $0x38] sm:$0xff]
    %v71 = vld [vmem:[#allocation2 + $0x40] sm:$0xff]
    %v72 = vld [vmem:[#allocation2 + $0x48] sm:$0xff]
    %v73 = vld [vmem:[#allocation2 + $0x50] sm:$0xff]
    %v74 = vld [vmem:[#allocation2 + $0x58] sm:$0xff]
    %v75 = vld [vmem:[#allocation2 + $0x60] sm:$0xff]
    %v76 = vld [vmem:[#allocation2 + $0x68] sm:$0xff]
    %v77 = vld [vmem:[#allocation2 + $0x70] sm:$0xff]
    %v78 = vld [vmem:[#allocation2 + $0x78] sm:$0xff]
    %v79 = vpack.c.bf16 %v64, %v63
    %v80 = vpack.c.bf16 %v66, %v65
    %v81 = vpack.c.bf16 %v68, %v67
    %v82 = vpack.c.bf16 %v70, %v69
    %v83 = vpack.c.bf16 %v72, %v71
    %v84 = vpack.c.bf16 %v74, %v73
    %v85 = vpack.c.bf16 %v76, %v75
    %v86 = vpack.c.bf16 %v78, %v77
    %v87 = vld [vmem:[#allocation5] sm:$0xf]
    %v88 = vld [vmem:[#allocation5 + $0x4] sm:$0xf]
    %v89 = vld [vmem:[#allocation5 + $0x8] sm:$0xf]
    %v90 = vld [vmem:[#allocation5 + $0xc] sm:$0xf]
    %v91 = vld [vmem:[#allocation5 + $0x10] sm:$0xf]
    %v92 = vld [vmem:[#allocation5 + $0x14] sm:$0xf]
    %v93 = vld [vmem:[#allocation5 + $0x18] sm:$0xf]
    %v94 = vld [vmem:[#allocation5 + $0x1c] sm:$0xf]
    %v95 = vld [vmem:[#allocation5 + $0x20] sm:$0xf]
    %v96 = vld [vmem:[#allocation5 + $0x24] sm:$0xf]
    %v97 = vld [vmem:[#allocation5 + $0x28] sm:$0xf]
    %v98 = vld [vmem:[#allocation5 + $0x2c] sm:$0xf]
    %v99 = vld [vmem:[#allocation5 + $0x30] sm:$0xf]
    %v100 = vld [vmem:[#allocation5 + $0x34] sm:$0xf]
    %v101 = vld [vmem:[#allocation5 + $0x38] sm:$0xf]
    %v102 = vld [vmem:[#allocation5 + $0x3c] sm:$0xf]
    %v103 = vld [vmem:[%s2] sm:$0x1]
    %v105 = vlaneseq
    %v106 = vshrl.u32 %v105, 7
    %v107 = vsub.s32 0, %v106
    %v108 = vrot.slane %v103, %v107
    %v126 = vunpack.c.l.b16 %v87
    %v127 = vunpack.c.l.b16 %v88
    %v128 = vunpack.c.l.b16 %v89
    %v129 = vunpack.c.l.b16 %v90
    %v130 = vunpack.c.l.b16 %v91
    %v131 = vunpack.c.l.b16 %v92
    %v132 = vunpack.c.l.b16 %v93
    %v133 = vunpack.c.l.b16 %v94
    %v134 = vunpack.c.l.b16 %v95
    %v135 = vunpack.c.l.b16 %v96
    %v136 = vunpack.c.l.b16 %v97
    %v137 = vunpack.c.l.b16 %v98
    %v138 = vunpack.c.l.b16 %v99
    %v139 = vunpack.c.l.b16 %v100
    %v140 = vunpack.c.l.b16 %v101
    %v141 = vunpack.c.l.b16 %v102
    %v142 = vpack.c.b16 %v127, %v126
    %v143 = vpack.c.b16 %v129, %v128
    %v144 = vpack.c.b16 %v131, %v130
    %v145 = vpack.c.b16 %v133, %v132
    %v146 = vpack.c.b16 %v135, %v134
    %v147 = vpack.c.b16 %v137, %v136
    %v148 = vpack.c.b16 %v139, %v138
    %v149 = vpack.c.b16 %v141, %v140
    %158 = vmatprep.subr.bf16.mxu0 0
    %159 = vmatpush1.bf16.msra.mxu0 %v142
    %160 = vmatprep.subr.bf16.mxu0 0
    %161 = vmatpush1.bf16.msra.mxu0 %v143
    %162 = vmatprep.subr.bf16.mxu0 0
    %163 = vmatpush1.bf16.msra.mxu0 %v144
    %164 = vmatprep.subr.bf16.mxu0 0
    %165 = vmatpush1.bf16.msra.mxu0 %v145
    %166 = vmatprep.subr.bf16.mxu0 0
    %167 = vmatpush1.bf16.msra.mxu0 %v146
    %168 = vmatprep.subr.bf16.mxu0 0
    %169 = vmatpush1.bf16.msra.mxu0 %v147
    %170 = vmatprep.subr.bf16.mxu0 0
    %171 = vmatpush1.bf16.msra.mxu0 %v148
    %172 = vmatprep.subr.bf16.mxu0 0
    %173 = vmatpush1.bf16.msra.mxu0 %v149
    %174 = vmatprep.subr.bf16.mxu0 0
    %175 = vmatpush1.bf16.msra.mxu0 0
    %176 = vmatprep.subr.bf16.mxu0 0
    %177 = vmatpush1.bf16.msra.mxu0 0
    %178 = vmatprep.subr.bf16.mxu0 0
    %179 = vmatpush1.bf16.msra.mxu0 0
    %180 = vmatprep.subr.bf16.mxu0 0
    %181 = vmatpush1.bf16.msra.mxu0 0
    %182 = vmatprep.subr.bf16.mxu0 0
    %183 = vmatpush1.bf16.msra.mxu0 0
    %184 = vmatprep.subr.bf16.mxu0 0
    %185 = vmatpush1.bf16.msra.mxu0 0
    %186 = vmatprep.subr.bf16.mxu0 0
    %187 = vmatpush1.bf16.msra.mxu0 0
    %188 = vmatprep.subr.bf16.mxu0 0
    %189 = vmatpush1.bf16.msra.mxu0 0
    %190 = vmatprep.mubr.bf16.mxu0 0
    %191 = vmatmul.mubr.bf16.gmra.mrb[0].mxu0 %v79
    %v192 = vpop.f32.mrb[0].mxu0
    %v193 = vadd.f32 %v108, %v192
    %v194 = vpop.f32.mrb[0].mxu0
    %v195 = vpop.f32.mrb[0].mxu0
    %v196 = vadd.f32 %v108, %v195
    %v197 = vpop.f32.mrb[0].mxu0
    %198 = vmatprep.mubr.bf16.mxu0 0
    %199 = vmatmul.mubr.bf16.gmra.mrb[0].mxu0 %v80
    %v200 = vpop.f32.mrb[0].mxu0
    %v201 = vadd.f32 %v108, %v200
    %v202 = vpop.f32.mrb[0].mxu0
    %v203 = vpop.f32.mrb[0].mxu0
    %v204 = vadd.f32 %v108, %v203
    %v205 = vpop.f32.mrb[0].mxu0
    %206 = vmatprep.mubr.bf16.mxu0 0
    %207 = vmatmul.mubr.bf16.gmra.mrb[0].mxu0 %v81
    %v208 = vpop.f32.mrb[0].mxu0
    %v209 = vadd.f32 %v108, %v208
    %v210 = vpop.f32.mrb[0].mxu0
    %v211 = vpop.f32.mrb[0].mxu0
    %v212 = vadd.f32 %v108, %v211
    %v213 = vpop.f32.mrb[0].mxu0
    %214 = vmatprep.mubr.bf16.mxu0 0
    %215 = vmatmul.mubr.bf16.gmra.mrb[0].mxu0 %v82
    %v216 = vpop.f32.mrb[0].mxu0
    %v217 = vadd.f32 %v108, %v216
    %v218 = vpop.f32.mrb[0].mxu0
    %v219 = vpop.f32.mrb[0].mxu0
    %v220 = vadd.f32 %v108, %v219
    %v221 = vpop.f32.mrb[0].mxu0
    %222 = vmatprep.mubr.bf16.mxu0 0
    %223 = vmatmul.mubr.bf16.gmra.mrb[0].mxu0 %v83
    %v224 = vpop.f32.mrb[0].mxu0
    %v225 = vadd.f32 %v108, %v224
    %v226 = vpop.f32.mrb[0].mxu0
    %v227 = vpop.f32.mrb[0].mxu0
    %v228 = vadd.f32 %v108, %v227
    %v229 = vpop.f32.mrb[0].mxu0
    %230 = vmatprep.mubr.bf16.mxu0 0
    %231 = vmatmul.mubr.bf16.gmra.mrb[0].mxu0 %v84
    %v232 = vpop.f32.mrb[0].mxu0
    %v233 = vadd.f32 %v108, %v232
    %v234 = vpop.f32.mrb[0].mxu0
    %v235 = vpop.f32.mrb[0].mxu0
    %v236 = vadd.f32 %v108, %v235
    %v237 = vpop.f32.mrb[0].mxu0
    %238 = vmatprep.mubr.bf16.mxu0 0
    %239 = vmatmul.mubr.bf16.gmra.mrb[0].mxu0 %v85
    %v240 = vpop.f32.mrb[0].mxu0
    %v241 = vadd.f32 %v108, %v240
    %v242 = vpop.f32.mrb[0].mxu0
    %v243 = vpop.f32.mrb[0].mxu0
    %v244 = vadd.f32 %v108, %v243
    %v245 = vpop.f32.mrb[0].mxu0
    %246 = vmatprep.mubr.bf16.mxu0 0
    %247 = vmatmul.mubr.bf16.gmra.mrb[0].mxu0 %v86
    %v248 = vpop.f32.mrb[0].mxu0
    %v249 = vadd.f32 %v108, %v248
    %v250 = vpop.f32.mrb[0].mxu0
    %v251 = vpop.f32.mrb[0].mxu0
    %v252 = vadd.f32 %v108, %v251
    %v253 = vpop.f32.mrb[0].mxu0
    %254 = vdwg.mxu0
    %v255 = vmax.f32 %v193, 0.0
    %v256 = vmax.f32 %v196, 0.0
    %v257 = vmax.f32 %v201, 0.0
    %v258 = vmax.f32 %v204, 0.0
    %v259 = vmax.f32 %v209, 0.0
    %v260 = vmax.f32 %v212, 0.0
    %v261 = vmax.f32 %v217, 0.0
    %v262 = vmax.f32 %v220, 0.0
    %v263 = vmax.f32 %v225, 0.0
    %v264 = vmax.f32 %v228, 0.0
    %v265 = vmax.f32 %v233, 0.0
    %v266 = vmax.f32 %v236, 0.0
    %v267 = vmax.f32 %v241, 0.0
    %v268 = vmax.f32 %v244, 0.0
    %v269 = vmax.f32 %v249, 0.0
    %v270 = vmax.f32 %v252, 0.0
    %v271 = vadd.f32 %v255, %v257
    %v272 = vadd.f32 %v271, %v259
    %v273 = vadd.f32 %v272, %v261
    %v274 = vadd.f32 %v273, %v263
    %v275 = vadd.f32 %v274, %v265
    %v276 = vadd.f32 %v275, %v267
    %v277 = vadd.f32 %v276, %v269
    %v278 = vadd.f32 %v256, %v258
    %v279 = vadd.f32 %v278, %v260
    %v280 = vadd.f32 %v279, %v262
    %v281 = vadd.f32 %v280, %v264
    %v282 = vadd.f32 %v281, %v266
    %v283 = vadd.f32 %v282, %v268
    %v284 = vadd.f32 %v283, %v270
    %v285 = vmul.f32 %v277, 0.125
    %v286 = vmul.f32 %v284, 0.125
    %v287 = vpack.c.bf16 %v286, %v285
    %v288 = vld [vmem:[#allocation7] sm:$0xf]
    %v289 = vld [vmem:[#allocation7 + $0x4] sm:$0xf]
    %v290 = vld [vmem:[#allocation7 + $0x8] sm:$0xf]
    %v291 = vld [vmem:[#allocation7 + $0xc] sm:$0xf]
    %v292 = vld [vmem:[#allocation7 + $0x10] sm:$0xf]
    %v293 = vld [vmem:[#allocation7 + $0x14] sm:$0xf]
    %v294 = vld [vmem:[#allocation7 + $0x18] sm:$0xf]
    %v295 = vld [vmem:[#allocation7 + $0x1c] sm:$0xf]
    %v296 = vld [vmem:[#allocation7 + $0x20] sm:$0xf]
    %v297 = vld [vmem:[#allocation7 + $0x24] sm:$0xf]
    %v298 = vld [vmem:[#allocation7 + $0x28] sm:$0xf]
    %v299 = vld [vmem:[#allocation7 + $0x2c] sm:$0xf]
    %v300 = vld [vmem:[#allocation7 + $0x30] sm:$0xf]
    %v301 = vld [vmem:[#allocation7 + $0x34] sm:$0xf]
    %v302 = vld [vmem:[#allocation7 + $0x38] sm:$0xf]
    %v303 = vld [vmem:[#allocation7 + $0x3c] sm:$0xf]
    %v304 = vld [vmem:[%s4] sm:$0x1]
    %v306 = vlaneseq
    %v307 = vshrl.u32 %v306, 7
    %v308 = vsub.s32 0, %v307
    %v309 = vrot.slane %v304, %v308
    %v327 = vunpack.c.l.b16 %v288
    %v328 = vunpack.c.l.b16 %v289
    %v329 = vunpack.c.l.b16 %v290
    %v330 = vunpack.c.l.b16 %v291
    %v331 = vunpack.c.l.b16 %v292
    %v332 = vunpack.c.l.b16 %v293
    %v333 = vunpack.c.l.b16 %v294
    %v334 = vunpack.c.l.b16 %v295
    %v335 = vunpack.c.l.b16 %v296
    %v336 = vunpack.c.l.b16 %v297
    %v337 = vunpack.c.l.b16 %v298
    %v338 = vunpack.c.l.b16 %v299
    %v339 = vunpack.c.l.b16 %v300
    %v340 = vunpack.c.l.b16 %v301
    %v341 = vunpack.c.l.b16 %v302
    %v342 = vunpack.c.l.b16 %v303
    %v343 = vpack.c.b16 %v328, %v327
    %v344 = vpack.c.b16 %v330, %v329
    %v345 = vpack.c.b16 %v332, %v331
    %v346 = vpack.c.b16 %v334, %v333
    %v347 = vpack.c.b16 %v336, %v335
    %v348 = vpack.c.b16 %v338, %v337
    %v349 = vpack.c.b16 %v340, %v339
    %v350 = vpack.c.b16 %v342, %v341
    %359 = vmatprep.subr.bf16.mxu0 0
    %360 = vmatpush1.bf16.msra.mxu0 %v343
    %361 = vmatprep.subr.bf16.mxu0 0
    %362 = vmatpush1.bf16.msra.mxu0 %v344
    %363 = vmatprep.subr.bf16.mxu0 0
    %364 = vmatpush1.bf16.msra.mxu0 %v345
    %365 = vmatprep.subr.bf16.mxu0 0
    %366 = vmatpush1.bf16.msra.mxu0 %v346
    %367 = vmatprep.subr.bf16.mxu0 0
    %368 = vmatpush1.bf16.msra.mxu0 %v347
    %369 = vmatprep.subr.bf16.mxu0 0
    %370 = vmatpush1.bf16.msra.mxu0 %v348
    %371 = vmatprep.subr.bf16.mxu0 0
    %372 = vmatpush1.bf16.msra.mxu0 %v349
    %373 = vmatprep.subr.bf16.mxu0 0
    %374 = vmatpush1.bf16.msra.mxu0 %v350
    %375 = vmatprep.subr.bf16.mxu0 0
    %376 = vmatpush1.bf16.msra.mxu0 0
    %377 = vmatprep.subr.bf16.mxu0 0
    %378 = vmatpush1.bf16.msra.mxu0 0
    %379 = vmatprep.subr.bf16.mxu0 0
    %380 = vmatpush1.bf16.msra.mxu0 0
    %381 = vmatprep.subr.bf16.mxu0 0
    %382 = vmatpush1.bf16.msra.mxu0 0
    %383 = vmatprep.subr.bf16.mxu0 0
    %384 = vmatpush1.bf16.msra.mxu0 0
    %385 = vmatprep.subr.bf16.mxu0 0
    %386 = vmatpush1.bf16.msra.mxu0 0
    %387 = vmatprep.subr.bf16.mxu0 0
    %388 = vmatpush1.bf16.msra.mxu0 0
    %389 = vmatprep.subr.bf16.mxu0 0
    %390 = vmatpush1.bf16.msra.mxu0 0
    %391 = vmatprep.mubr.bf16.mxu0 0
    %392 = vmatmul.mubr.bf16.gmra.mrb[0].mxu0 %v287
    %v393 = vpop.f32.mrb[0].mxu0
    %v394 = vadd.f32 %v309, %v393
    %v395 = vpop.f32.mrb[0].mxu0
    %v396 = vpop.f32.mrb[0].mxu0
    %v397 = vadd.f32 %v309, %v396
    %v398 = vpop.f32.mrb[0].mxu0
    %399 = vdwg.mxu0
    %v400 = vsub.f32 0.0, %v394
    %v401 = vsub.f32 0.0, %v397
    %v402 = vmul.f32 %v400, 1.442695
    %v403 = vpow.pop %v402
    %v404 = vmul.f32 %v401, 1.442695
    %v405 = vpow.pop %v404
    %v406 = vadd.f32 %v403, 1.0
    %v407 = vadd.f32 %v405, 1.0
    %v408 = vrcp.pop %v406
    %v409 = vrcp.pop %v407
    %v410 = vmin.f32 %v63, %v67
    %v411 = vmin.f32 %v65, %v69
    %v412 = vmin.f32 %v410, %v71
    %v413 = vmin.f32 %v411, %v73
    %v414 = vmin.f32 %v412, %v75
    %v415 = vmin.f32 %v413, %v77
    %v416 = vmin.f32 %v414, %v415
    %v417 = vmin.f32 %v64, %v68
    %v418 = vmin.f32 %v66, %v70
    %v419 = vmin.f32 %v417, %v72
    %v420 = vmin.f32 %v418, %v74
    %v421 = vmin.f32 %v419, %v76
    %v422 = vmin.f32 %v420, %v78
    %v423 = vmin.f32 %v421, %v422
    %v424 = vmul.f32 %v416, %v408
    %v425 = vmul.f32 %v423, %v409
    %426 = vst [vmem:[#allocation8] sm:$0xff] %v424
    %427 = vst [vmem:[#allocation8 + $0x8] sm:$0xff] %v425
    // Predicated region
    $region34: #{tpu_custom_call.1} parent=1 // pred_check
      _
    $region35: #{tpu_custom_call.1} parent=1 // pred_check_branch
      %429 = sbr.rel (0) target = $region37
    $region36: #{tpu_custom_call.1} parent=1 // pred_region
      %s431 = ssub.s32 256, 256
      %432 = vsyncadd [#allocation4], %s431
      %s433 = sshll.u32 [#allocation8], 4
      %s434 = int_to_ptr.vmem [resolvable:$true] %s433
      %439 = dma.vmem_to_hbm [thread:$0]  %s434, 256, %s5, [#allocation4], 128, 128, 8
    $region37: #{tpu_custom_call.1} parent=1 // pred_fallthru
      _
    // Predicated region
    $region38: #{tpu_custom_call.1} parent=1 // pred_check
      _
    $region39: #{tpu_custom_call.1} parent=1 // pred_check_branch
      %441 = sbr.rel (0) target = $region41
    $region40: #{tpu_custom_call.1} parent=1 // pred_region
      %442 = dma.done [#allocation4], 256
    $region41: #{tpu_custom_call.1} parent=1 // pred_fallthru
      _
    %443 = vsyncpa [#allocation3], 1
    %444 = vsyncpa [#allocation6], 1
    %445 = vsyncpa [#allocation4], 1

</llo_original>
